<compile_context>
chip_gen: v7x
topology: tpu7x:2x2x1
jax: 0.10.0
libtpu: 0.0.40
codegen_flags: <defaults>
</compile_context>

<pallas_src>
import jax
import jax.numpy as jnp
from jax.experimental import pallas as pl
from jax.experimental.pallas import tpu as pltpu


def _attention_kernel(q_ref, k_ref, v_ref, mask_ref, o_ref, m_sc, l_sc, acc_sc):
    # Blocks: q (TB,1,D), k (TB,TS,D), v (TB,TS,D), mask (TB,1,TS) i8,
    #         o (TB,1,D); scratch m/l (TB,1,1) f32, acc (TB,1,D) f32.
    j = pl.program_id(1)

    @pl.when(j == 0)
    def _():
        m_sc[...] = jnp.full_like(m_sc, -jnp.inf)
        l_sc[...] = jnp.zeros_like(l_sc)
        acc_sc[...] = jnp.zeros_like(acc_sc)

    q = q_ref[...]
    k = k_ref[...]
    v = v_ref[...]

    # _score: dot-product attention score (base class leaves it abstract).
    # TODO(synk): base class `_score` is unimplemented; dot-product chosen.
    # Batched last-dim contraction -> no K transpose, f32 MXU accumulation.
    s = jnp.einsum("bqd,bkd->bqk", q, k,
                   preferred_element_type=jnp.float32)            # (TB,1,TS)

    # masked_fill(mask == 0, -INF): large finite negative so fully-masked rows
    # degrade to a uniform distribution instead of NaN.
    mvalid = mask_ref[...].astype(jnp.float32)                    # (TB,1,TS)
    s = jnp.where(mvalid == 0.0, jnp.float32(-1e30), s)

    # Online softmax accumulation over kv tiles.
    m_prev = m_sc[...]
    m_new = jnp.maximum(m_prev, jnp.max(s, axis=-1, keepdims=True))
    alpha = jnp.exp(m_prev - m_new)                               # (TB,1,1)
    p = jnp.exp(s - m_new)                                        # (TB,1,TS)
    l_sc[...] = alpha * l_sc[...] + jnp.sum(p, axis=-1, keepdims=True)
    acc_sc[...] = alpha * acc_sc[...] + jnp.einsum(
        "bqk,bkd->bqd", p.astype(v.dtype), v,
        preferred_element_type=jnp.float32)                       # (TB,1,D)
    m_sc[...] = m_new

    @pl.when(j == pl.num_programs(1) - 1)
    def _():
        # Exact divide: runs once per output row, cost is negligible.
        o_ref[...] = (acc_sc[...] / l_sc[...]).astype(o_ref.dtype)


def _choose_tiles(B, S, D, kv_itemsize, kv_budget_bytes, vreg_cap):
    """Pick (TB, TS) with TB | B and TS | S (no padding), sized to budgets."""
    # Batch tile: largest divisor of B, capped at 8 rows/step, and capped so
    # the batch grid keeps >= 2 steps when B >= 2 (v7x two-TC sharding).
    tb_cap = B if B == 1 else max(1, B // 2)
    tb_cap = min(tb_cap, 8)
    tb = 1
    for cand in range(1, tb_cap + 1):
        if B % cand == 0:
            tb = cand

    def ok(ts):
        kv_bytes = 4 * tb * ts * D * kv_itemsize       # K+V, double-buffered
        score_vregs = tb * ((ts + 127) // 128)          # (TB,1,TS) f32 temps
        return kv_bytes <= kv_budget_bytes and score_vregs <= vreg_cap

    if ok(S):
        ts = S
    else:
        ts = None
        for cand in range(128, S, 128):                 # lane-aligned divisors
            if S % cand == 0 and ok(cand):
                ts = cand                               # keep the largest
        if ts is None:
            # No lane-aligned divisor fits: fall back to one full-S step.
            # TODO(synk): ragged S tiles (iota tail mask) for awkward S values.
            ts = S
    return tb, ts


def attention(query, key, value, mask, *,
              kv_budget_bytes=24 * 1024 * 1024, vreg_cap=16):
    """query (B,1,D), key (B,S,D), value (B,S,D), mask (B,S) -> (B,D)."""
    B, one, D = query.shape
    assert one == 1
    S = key.shape[1]
    kv_itemsize = key.dtype.itemsize

    TB, TS = _choose_tiles(B, S, D, kv_itemsize, kv_budget_bytes, vreg_cap)
    nb, ns = B // TB, S // TS

    # int8 mask (4x less DMA than int32); reshape to (B,1,S) so the block's
    # trailing dims satisfy the (8,128)-or-full-dim constraint for any TB.
    mask3 = mask.astype(jnp.int8).reshape(B, 1, S)

    out_item = query.dtype.itemsize
    cost = pl.CostEstimate(
        flops=4 * B * S * D,                 # QK^T + PV
        transcendentals=B * S,               # exp
        bytes_accessed=(2 * B * S * D * kv_itemsize   # K + V
                        + B * D * out_item            # Q
                        + B * S * 1                   # mask (i8)
                        + B * D * out_item))          # output

    out = pl.pallas_call(
        _attention_kernel,
        out_shape=jax.ShapeDtypeStruct((B, 1, D), query.dtype),
        grid=(nb, ns),
        in_specs=[
            pl.BlockSpec((TB, 1, D), lambda b, j: (b, 0, 0)),    # query
            pl.BlockSpec((TB, TS, D), lambda b, j: (b, j, 0)),   # key
            pl.BlockSpec((TB, TS, D), lambda b, j: (b, j, 0)),   # value
            pl.BlockSpec((TB, 1, TS), lambda b, j: (b, 0, j)),   # mask (i8)
        ],
        out_specs=pl.BlockSpec((TB, 1, D), lambda b, j: (b, 0, 0)),
        scratch_shapes=[
            pltpu.VMEM((TB, 1, 1), jnp.float32),   # running max
            pltpu.VMEM((TB, 1, 1), jnp.float32),   # running denom
            pltpu.VMEM((TB, 1, D), jnp.float32),   # output accumulator
        ],
        compiler_params=pltpu.CompilerParams(
            dimension_semantics=("parallel", "arbitrary"),
            # Above v5e's 16 MiB default scoped limit, below v7x's 64 MiB
            # physical VMEM per TensorCore; tiles are budgeted to ~24 MiB.
            vmem_limit_bytes=48 * 1024 * 1024,
        ),
        cost_estimate=cost,
    )(query, key, value, mask3)
    return out[:, 0, :]   # .squeeze(1)


def attention_ref(query, key, value, mask):
    score = jnp.einsum("bqd,bkd->bqk", query, key)
    score = jnp.where(mask[:, None, :] == 0, -jnp.inf, score)
    prob = jax.nn.softmax(score, axis=-1)
    return jnp.einsum("bqk,bkd->bqd", prob, value).squeeze(1)


if __name__ == "__main__":
    B, S, D = 2, 8, 32
    root = jax.random.PRNGKey(0)
    kq, kk, kv, km = jax.random.split(root, 4)
    query = jax.random.normal(kq, (B, 1, D), dtype=jnp.float32)
    key_t = jax.random.normal(kk, (B, S, D), dtype=jnp.float32)
    value = jax.random.normal(kv, (B, S, D), dtype=jnp.float32)
    # mask: 1 = keep, 0 = masked; ensure at least one kept position per row.
    mask = (jax.random.uniform(km, (B, S)) > 0.3).astype(jnp.int8)
    mask = mask.at[:, 0].set(1)

    out = attention(query, key_t, value, mask)
    jax.block_until_ready(out)

    ref = attention_ref(query, key_t, value, mask)
    assert out.shape == (B, D)
    assert jnp.allclose(out, ref, atol=1e-3, rtol=1e-3), "mismatch vs reference"
    print("KERNEL_OK")
</pallas_src>

<mosaic_0001>
module attributes {stable_mosaic.version = 11 : i64} {
  func.func @_attention_kernel(%arg0: i32, %arg1: i32, %arg2: memref<1x1x32xf32, #tpu.memory_space<vmem>>, %arg3: memref<1x8x32xf32, #tpu.memory_space<vmem>>, %arg4: memref<1x8x32xf32, #tpu.memory_space<vmem>>, %arg5: memref<1x1x8xi8, #tpu.memory_space<vmem>>, %arg6: memref<1x1x32xf32, #tpu.memory_space<vmem>>, %arg7: memref<1x1x1xf32, #tpu.memory_space<vmem>>, %arg8: memref<1x1x1xf32, #tpu.memory_space<vmem>>, %arg9: memref<1x1x32xf32, #tpu.memory_space<vmem>>) attributes {dimension_semantics = [#tpu.dimension_semantics<parallel>, #tpu.dimension_semantics<arbitrary>], iteration_bounds = array<i64: 2, 1>, scalar_prefetch = 0 : i64, scratch_operands = 3 : i64, tpu.core_type = #tpu.core_type<tc>, window_params = [{transform_indices = @transform_0, window_bounds = array<i64: 1, 1, 32>}, {transform_indices = @transform_1, window_bounds = array<i64: 1, 8, 32>}, {transform_indices = @transform_2, window_bounds = array<i64: 1, 8, 32>}, {transform_indices = @transform_3, window_bounds = array<i64: 1, 1, 8>}, {transform_indices = @transform_4, window_bounds = array<i64: 1, 1, 32>}]} {
    %c0_i32 = arith.constant 0 : i32
    %0 = arith.cmpi eq, %arg1, %c0_i32 : i32
    %1 = arith.extui %0 : i1 to i32
    %c0_i32_0 = arith.constant 0 : i32
    %2 = arith.cmpi ne, %1, %c0_i32_0 : i32
    scf.if %2 {
      %cst_37 = arith.constant 0xFF800000 : f32
      %38 = vector.broadcast %cst_37 : f32 to vector<1x1x1xf32>
      %c0_38 = arith.constant 0 : index
      %c0_39 = arith.constant 0 : index
      %c0_40 = arith.constant 0 : index
      %39 = vector.load %arg7[%c0_38, %c0_39, %c0_40] : memref<1x1x1xf32, #tpu.memory_space<vmem>>, vector<1x1x1xf32>
      tpu.vector_store %arg7[%c0_38, %c0_39, %c0_40], %38 {strides = array<i32>} : memref<1x1x1xf32, #tpu.memory_space<vmem>>, vector<1x1x1xf32>,
      %cst_41 = arith.constant 0.000000e+00 : f32
      %40 = vector.broadcast %cst_41 : f32 to vector<1x1x1xf32>
      %c0_42 = arith.constant 0 : index
      %c0_43 = arith.constant 0 : index
      %c0_44 = arith.constant 0 : index
      %41 = vector.load %arg8[%c0_42, %c0_43, %c0_44] : memref<1x1x1xf32, #tpu.memory_space<vmem>>, vector<1x1x1xf32>
      tpu.vector_store %arg8[%c0_42, %c0_43, %c0_44], %40 {strides = array<i32>} : memref<1x1x1xf32, #tpu.memory_space<vmem>>, vector<1x1x1xf32>,
      %cst_45 = arith.constant 0.000000e+00 : f32
      %42 = vector.broadcast %cst_45 : f32 to vector<1x1x32xf32>
      %c0_46 = arith.constant 0 : index
      %c0_47 = arith.constant 0 : index
      %c0_48 = arith.constant 0 : index
      %43 = vector.load %arg9[%c0_46, %c0_47, %c0_48] : memref<1x1x32xf32, #tpu.memory_space<vmem>>, vector<1x1x32xf32>
      tpu.vector_store %arg9[%c0_46, %c0_47, %c0_48], %42 {strides = array<i32>} : memref<1x1x32xf32, #tpu.memory_space<vmem>>, vector<1x1x32xf32>,
    } else {
    }
    %c0 = arith.constant 0 : index
    %c0_1 = arith.constant 0 : index
    %c0_2 = arith.constant 0 : index
    %3 = vector.load %arg2[%c0, %c0_1, %c0_2] : memref<1x1x32xf32, #tpu.memory_space<vmem>>, vector<1x1x32xf32>
    %c0_3 = arith.constant 0 : index
    %c0_4 = arith.constant 0 : index
    %c0_5 = arith.constant 0 : index
    %4 = vector.load %arg3[%c0_3, %c0_4, %c0_5] : memref<1x8x32xf32, #tpu.memory_space<vmem>>, vector<1x8x32xf32>
    %c0_6 = arith.constant 0 : index
    %c0_7 = arith.constant 0 : index
    %c0_8 = arith.constant 0 : index
    %5 = vector.load %arg4[%c0_6, %c0_7, %c0_8] : memref<1x8x32xf32, #tpu.memory_space<vmem>>, vector<1x8x32xf32>
    "tpu.trace_start"() <{level = 10 : i32, message = "bqd,bkd->bqk"}> : () -> ()
    %cst = arith.constant dense<0.000000e+00> : vector<1x1x8xf32>
    %6 = tpu.matmul %3, %4, %cst {dimension_numbers = #tpu.dot_dimension_numbers<[2], [2], [1], [1], [0, 0, 0, 1, 1, 1], [0], [0]>} : vector<1x1x32xf32>, vector<1x8x32xf32>, vector<1x1x8xf32> -> vector<1x1x8xf32>
    "tpu.trace_stop"() : () -> ()
    %c0_9 = arith.constant 0 : index
    %c0_10 = arith.constant 0 : index
    %c0_11 = arith.constant 0 : index
    %7 = vector.load %arg5[%c0_9, %c0_10, %c0_11] : memref<1x1x8xi8, #tpu.memory_space<vmem>>, vector<1x1x8xi8>
    %8 = arith.sitofp %7 : vector<1x1x8xi8> to vector<1x1x8xf32>
    %cst_12 = arith.constant 0.000000e+00 : f32
    %9 = vector.broadcast %cst_12 : f32 to vector<1x1x8xf32>
    %10 = arith.cmpf oeq, %8, %9 : vector<1x1x8xf32>
    %cst_13 = arith.constant -1.000000e+30 : f32
    %11 = vector.broadcast %cst_13 : f32 to vector<1x1x8xf32>
    %12 = arith.select %10, %11, %6 : vector<1x1x8xi1>, vector<1x1x8xf32>
    %c0_14 = arith.constant 0 : index
    %c0_15 = arith.constant 0 : index
    %c0_16 = arith.constant 0 : index
    %13 = vector.load %arg7[%c0_14, %c0_15, %c0_16] : memref<1x1x1xf32, #tpu.memory_space<vmem>>, vector<1x1x1xf32>
    %cst_17 = arith.constant dense<0xFF800000> : vector<1x1xf32>
    %14 = vector.multi_reduction <maximumf>, %12, %cst_17 [2] : vector<1x1x8xf32> to vector<1x1xf32>
    %15 = vector.shape_cast %14 : vector<1x1xf32> to vector<1x1x1xf32>
    %16 = arith.maximumf %13, %15 : vector<1x1x1xf32>
    %17 = arith.subf %13, %16 : vector<1x1x1xf32>
    %18 = math.exp %17 : vector<1x1x1xf32>
    %19 = vector.broadcast %16 : vector<1x1x1xf32> to vector<1x1x8xf32>
    %20 = arith.subf %12, %19 : vector<1x1x8xf32>
    %21 = math.exp %20 : vector<1x1x8xf32>
    %c0_18 = arith.constant 0 : index
    %c0_19 = arith.constant 0 : index
    %c0_20 = arith.constant 0 : index
    %22 = vector.load %arg8[%c0_18, %c0_19, %c0_20] : memref<1x1x1xf32, #tpu.memory_space<vmem>>, vector<1x1x1xf32>
    %23 = arith.mulf %18, %22 : vector<1x1x1xf32>
    %cst_21 = arith.constant dense<0.000000e+00> : vector<1x1xf32>
    %24 = vector.multi_reduction <add>, %21, %cst_21 [2] : vector<1x1x8xf32> to vector<1x1xf32>
    %25 = vector.shape_cast %24 : vector<1x1xf32> to vector<1x1x1xf32>
    %26 = arith.addf %23, %25 : vector<1x1x1xf32>
    %c0_22 = arith.constant 0 : index
    %c0_23 = arith.constant 0 : index
    %c0_24 = arith.constant 0 : index
    %27 = vector.load %arg8[%c0_22, %c0_23, %c0_24] : memref<1x1x1xf32, #tpu.memory_space<vmem>>, vector<1x1x1xf32>
    tpu.vector_store %arg8[%c0_22, %c0_23, %c0_24], %26 {strides = array<i32>} : memref<1x1x1xf32, #tpu.memory_space<vmem>>, vector<1x1x1xf32>,
    %c0_25 = arith.constant 0 : index
    %c0_26 = arith.constant 0 : index
    %c0_27 = arith.constant 0 : index
    %28 = vector.load %arg9[%c0_25, %c0_26, %c0_27] : memref<1x1x32xf32, #tpu.memory_space<vmem>>, vector<1x1x32xf32>
    %29 = vector.broadcast %18 : vector<1x1x1xf32> to vector<1x1x32xf32>
    %30 = arith.mulf %29, %28 : vector<1x1x32xf32>
    "tpu.trace_start"() <{level = 10 : i32, message = "bqk,bkd->bqd"}> : () -> ()
    %cst_28 = arith.constant dense<0.000000e+00> : vector<1x1x32xf32>
    %31 = tpu.matmul %21, %5, %cst_28 {dimension_numbers = #tpu.dot_dimension_numbers<[2], [1], [1], [2], [0, 0, 0, 1, 1, 2], [0], [0]>} : vector<1x1x8xf32>, vector<1x8x32xf32>, vector<1x1x32xf32> -> vector<1x1x32xf32>
    "tpu.trace_stop"() : () -> ()
    %32 = arith.addf %30, %31 : vector<1x1x32xf32>
    %c0_29 = arith.constant 0 : index
    %c0_30 = arith.constant 0 : index
    %c0_31 = arith.constant 0 : index
    %33 = vector.load %arg9[%c0_29, %c0_30, %c0_31] : memref<1x1x32xf32, #tpu.memory_space<vmem>>, vector<1x1x32xf32>
    tpu.vector_store %arg9[%c0_29, %c0_30, %c0_31], %32 {strides = array<i32>} : memref<1x1x32xf32, #tpu.memory_space<vmem>>, vector<1x1x32xf32>,
    %c0_32 = arith.constant 0 : index
    %c0_33 = arith.constant 0 : index
    %c0_34 = arith.constant 0 : index
    %34 = vector.load %arg7[%c0_32, %c0_33, %c0_34] : memref<1x1x1xf32, #tpu.memory_space<vmem>>, vector<1x1x1xf32>
    tpu.vector_store %arg7[%c0_32, %c0_33, %c0_34], %16 {strides = array<i32>} : memref<1x1x1xf32, #tpu.memory_space<vmem>>, vector<1x1x1xf32>,
    %c0_i32_35 = arith.constant 0 : i32
    %35 = arith.cmpi eq, %arg1, %c0_i32_35 : i32
    %36 = arith.extui %35 : i1 to i32
    %c0_i32_36 = arith.constant 0 : i32
    %37 = arith.cmpi ne, %36, %c0_i32_36 : i32
    scf.if %37 {
      %c0_37 = arith.constant 0 : index
      %c0_38 = arith.constant 0 : index
      %c0_39 = arith.constant 0 : index
      %38 = vector.load %arg9[%c0_37, %c0_38, %c0_39] : memref<1x1x32xf32, #tpu.memory_space<vmem>>, vector<1x1x32xf32>
      %c0_40 = arith.constant 0 : index
      %c0_41 = arith.constant 0 : index
      %c0_42 = arith.constant 0 : index
      %39 = vector.load %arg8[%c0_40, %c0_41, %c0_42] : memref<1x1x1xf32, #tpu.memory_space<vmem>>, vector<1x1x1xf32>
      %40 = vector.broadcast %39 : vector<1x1x1xf32> to vector<1x1x32xf32>
      %41 = arith.divf %38, %40 : vector<1x1x32xf32>
      %c0_43 = arith.constant 0 : index
      %c0_44 = arith.constant 0 : index
      %c0_45 = arith.constant 0 : index
      %42 = vector.load %arg6[%c0_43, %c0_44, %c0_45] : memref<1x1x32xf32, #tpu.memory_space<vmem>>, vector<1x1x32xf32>
      tpu.vector_store %arg6[%c0_43, %c0_44, %c0_45], %41 {strides = array<i32>} : memref<1x1x32xf32, #tpu.memory_space<vmem>>, vector<1x1x32xf32>,
    } else {
    }
    return
  }
  func.func @transform_0(%arg0: i32, %arg1: i32) -> (i32, i32, i32) {
    %c0_i32 = arith.constant 0 : i32
    %c0_i32_0 = arith.constant 0 : i32
    %c0_i32_1 = arith.constant 0 : i32
    return %arg0, %c0_i32, %c0_i32_0 : i32, i32, i32
  }
  func.func @transform_1(%arg0: i32, %arg1: i32) -> (i32, i32, i32) {
    %c0_i32 = arith.constant 0 : i32
    %c0_i32_0 = arith.constant 0 : i32
    return %arg0, %arg1, %c0_i32 : i32, i32, i32
  }
  func.func @transform_2(%arg0: i32, %arg1: i32) -> (i32, i32, i32) {
    %c0_i32 = arith.constant 0 : i32
    %c0_i32_0 = arith.constant 0 : i32
    return %arg0, %arg1, %c0_i32 : i32, i32, i32
  }
  func.func @transform_3(%arg0: i32, %arg1: i32) -> (i32, i32, i32) {
    %c0_i32 = arith.constant 0 : i32
    %c0_i32_0 = arith.constant 0 : i32
    return %arg0, %c0_i32, %arg1 : i32, i32, i32
  }
  func.func @transform_4(%arg0: i32, %arg1: i32) -> (i32, i32, i32) {
    %c0_i32 = arith.constant 0 : i32
    %c0_i32_0 = arith.constant 0 : i32
    %c0_i32_1 = arith.constant 0 : i32
    return %arg0, %c0_i32, %c0_i32_0 : i32, i32, i32
  }
}

</mosaic_0001>

<llo_original>
// kernel: tpu_custom_call.1
$region0: #{tpu_custom_call.1}
  #allocation0 [shape = 'u32[]', space=smem, size = 0x4, offset = 0x4, fixed_abs, tag = 'smem constant byte address 0x4 - core index']
  #allocation1 [shape = 'u32[144,128]{1,0:T(1,128)}', space=vmem, size = 0x12000, scoped, tag = 'internal scratch']
  #allocation2 [shape = 'f32[1,1,1]{2,1,0:T(1,128)}', space=vmem, size = 0x200, scoped, tag = 'scratch operand']
  #allocation3 [shape = 'f32[1,1,1]{2,1,0:T(1,128)}', space=vmem, size = 0x200, scoped, tag = 'scratch operand']
  #allocation4 [shape = 'f32[1,1,32]{2,1,0:T(1,128)}', space=vmem, size = 0x200, scoped, tag = 'scratch operand']
  %s0 = inlined_call_operand.vmem [shape: f32[2,1,32], index: 0, kind: input, shape index: {}]
  %s1 = inlined_call_operand.hbm [shape: f32[2,8,32], index: 1, kind: input, shape index: {}]
  %s2 = inlined_call_operand.hbm [shape: f32[2,8,32], index: 2, kind: input, shape index: {}]
  %s3 = inlined_call_operand.vmem [shape: s8[2,1,8], index: 3, kind: input, shape index: {}]
  %s4 = inlined_call_operand.hbm [shape: f32[2,1,32], index: 4, kind: output, shape index: {}]
  %s5 = sld [smem:[#allocation0]]
  $region65: #{tpu_custom_call.1} parent=0
    _
  %s7 = ssub.s32 1, %s5
  %s8 = scalar_select 0, %s7, %s5
  $region1: #{tpu_custom_call.1} parent=0
    #allocation5 [shape = 'u8[8192]{0}', space=vmem, size = 0x2000, scoped, tag = 'input window, operand 1']
    #allocation6 [shape = 's32[2]{0}', space=sflag, size = 0x8, scoped, tag = 'scoped memory for tpu_custom_call.1']
    #allocation7 [shape = 's32[2]{0}', space=sflag, size = 0x8, scoped, tag = 'scoped memory for tpu_custom_call.1']
    #allocation8 [shape = 'u8[8192]{0}', space=vmem, size = 0x2000, scoped, tag = 'input window, operand 2']
    #allocation9 [shape = 's32[2]{0}', space=sflag, size = 0x8, scoped, tag = 'scoped memory for tpu_custom_call.1']
    #allocation10 [shape = 'u8[1024]{0}', space=vmem, size = 0x400, scoped, tag = 'output window, operand 0']
    %9 = vsyncpa [#allocation6], 0
    %s10 = scalar_lea.sflag [#allocation6], 1
    %11 = vsyncpa %s10, 0
    %12 = vsyncpa [#allocation9], 0
    %s13 = scalar_lea.sflag [#allocation9], 1
    %14 = vsyncpa %s13, 0
    %15 = vsyncpa [#allocation7], 0
    %s16 = scalar_lea.sflag [#allocation7], 1
    %17 = vsyncpa %s16, 0
    loop: start=0, step=1, limit=4
    $region2: #{tpu_custom_call.1} parent=1 // loop_pre_header
      _
    $region3: #{tpu_custom_call.1} parent=1 // loop_header
      %s19 = sphi 0, %s23
      %p20 = scmp.ge.s32.totalorder %s19, 4
      %s26 = sphi 0, %s38
      %s27 = sphi 0, %s34
      %s28 = sphi 0, %s26
      %s29 = sphi 0, %s27
      %s30 = sphi 0, %s28
      %s31 = sphi 0, %s29
      %s41 = sphi 0, %s43
      %s44 = sphi 0, %s41
      %s45 = sphi 0, %s44
      %s61 = sphi 0, %s45
      %s69 = sphi 0, %s71
      %s72 = sphi 0, %s69
      %s73 = sphi 0, %s72
      %s89 = sphi 0, %s73
      %s97 = sphi 0, %s99
      %s100 = sphi 0, %s97
      %s101 = sphi 0, %s100
      %s117 = sphi 0, %s101
      %s125 = sphi 0, %s127
      %s128 = sphi 0, %s125
      %s129 = sphi 0, %s128
      %s145 = sphi 0, %s129
      %s151 = sphi 0, %s153
      %s154 = sphi 0, %s151
      %s155 = sphi 0, %s154
      %s171 = sphi 0, %s155
    $region4: #{tpu_custom_call.1} parent=1 // loop_header_branch
      %22 = sbr.rel (%p20) target = $region8
    $region5: #{tpu_custom_call.1} parent=1 // loop_body
      %s24 = ssub.s32 %s19, 1
      %s25 = ssub.s32 %s19, 2
      %s32 = sadd.s32 1, %s27
      %p33 = scmp.ge.s32.totalorder %s32, 1
      %s34 = scalar_select %p33, 0, %s32
      %s35 = sadd.s32 1, %s26
      %s36 = scalar_select %p33, %s35, %s26
      %p37 = scmp.ge.s32.totalorder %s36, 2
      %s38 = scalar_select %p37, 0, %s36
      %s39 = ssub.s32 %s26, %s38
      %p40 = scmp.eq.s32.totalorder %s39, 0
      %s42 = sadd.s32 %s41, 1
      %s43 = scalar_select %p40, %s41, %s42
      %p46 = pneg %p40
      %p47 = scmp.eq.s32.totalorder %s19, 1
      %p48 = por %p46, %p47
      %p49 = scmp.ne.s32.totalorder %s41, %s44
      %p50 = scmp.eq.s32.totalorder %s19, 0
      %p51 = por %p49, %p50
      %p52 = scmp.ne.s32.totalorder %s41, %s44
      %p53 = scmp.eq.s32.totalorder %s24, 1
      %p54 = por %p52, %p53
      %p55 = scmp.ne.s32.totalorder %s44, %s45
      %p56 = scmp.eq.s32.totalorder %s24, 0
      %p57 = por %p55, %p56
      %p58 = scmp.ne.s32.totalorder %s44, %s45
      %p59 = scmp.eq.s32.totalorder %s25, 1
      %p60 = por %p58, %p59
      %p62 = scmp.ne.s32.totalorder %s45, %s61
      %p63 = scmp.eq.s32.totalorder %s25, 0
      %p64 = por %p62, %p63
      %s65 = ssub.s32 %s26, %s38
      %s66 = ssub.s32 %s27, %s34
      %s67 = sor.u32 %s65, %s66
      %p68 = scmp.eq.s32.totalorder %s67, 0
      %s70 = sadd.s32 %s69, 1
      %s71 = scalar_select %p68, %s69, %s70
      %p74 = pneg %p68
      %p75 = scmp.eq.s32.totalorder %s19, 1
      %p76 = por %p74, %p75
      %p77 = scmp.ne.s32.totalorder %s69, %s72
      %p78 = scmp.eq.s32.totalorder %s19, 0
      %p79 = por %p77, %p78
      %p80 = scmp.ne.s32.totalorder %s69, %s72
      %p81 = scmp.eq.s32.totalorder %s24, 1
      %p82 = por %p80, %p81
      %p83 = scmp.ne.s32.totalorder %s72, %s73
      %p84 = scmp.eq.s32.totalorder %s24, 0
      %p85 = por %p83, %p84
      %p86 = scmp.ne.s32.totalorder %s72, %s73
      %p87 = scmp.eq.s32.totalorder %s25, 1
      %p88 = por %p86, %p87
      %p90 = scmp.ne.s32.totalorder %s73, %s89
      %p91 = scmp.eq.s32.totalorder %s25, 0
      %p92 = por %p90, %p91
      %s93 = ssub.s32 %s26, %s38
      %s94 = ssub.s32 %s27, %s34
      %s95 = sor.u32 %s93, %s94
      %p96 = scmp.eq.s32.totalorder %s95, 0
      %s98 = sadd.s32 %s97, 1
      %s99 = scalar_select %p96, %s97, %s98
      %p102 = pneg %p96
      %p103 = scmp.eq.s32.totalorder %s19, 1
      %p104 = por %p102, %p103
      %p105 = scmp.ne.s32.totalorder %s97, %s100
      %p106 = scmp.eq.s32.totalorder %s19, 0
      %p107 = por %p105, %p106
      %p108 = scmp.ne.s32.totalorder %s97, %s100
      %p109 = scmp.eq.s32.totalorder %s24, 1
      %p110 = por %p108, %p109
      %p111 = scmp.ne.s32.totalorder %s100, %s101
      %p112 = scmp.eq.s32.totalorder %s24, 0
      %p113 = por %p111, %p112
      %p114 = scmp.ne.s32.totalorder %s100, %s101
      %p115 = scmp.eq.s32.totalorder %s25, 1
      %p116 = por %p114, %p115
      %p118 = scmp.ne.s32.totalorder %s101, %s117
      %p119 = scmp.eq.s32.totalorder %s25, 0
      %p120 = por %p118, %p119
      %s121 = ssub.s32 %s26, %s38
      %s122 = ssub.s32 %s27, %s34
      %s123 = sor.u32 %s121, %s122
      %p124 = scmp.eq.s32.totalorder %s123, 0
      %s126 = sadd.s32 %s125, 1
      %s127 = scalar_select %p124, %s125, %s126
      %p130 = pneg %p124
      %p131 = scmp.eq.s32.totalorder %s19, 1
      %p132 = por %p130, %p131
      %p133 = scmp.ne.s32.totalorder %s125, %s128
      %p134 = scmp.eq.s32.totalorder %s19, 0
      %p135 = por %p133, %p134
      %p136 = scmp.ne.s32.totalorder %s125, %s128
      %p137 = scmp.eq.s32.totalorder %s24, 1
      %p138 = por %p136, %p137
      %p139 = scmp.ne.s32.totalorder %s128, %s129
      %p140 = scmp.eq.s32.totalorder %s24, 0
      %p141 = por %p139, %p140
      %p142 = scmp.ne.s32.totalorder %s128, %s129
      %p143 = scmp.eq.s32.totalorder %s25, 1
      %p144 = por %p142, %p143
      %p146 = scmp.ne.s32.totalorder %s129, %s145
      %p147 = scmp.eq.s32.totalorder %s25, 0
      %p148 = por %p146, %p147
      %s149 = ssub.s32 %s26, %s38
      %p150 = scmp.eq.s32.totalorder %s149, 0
      %s152 = sadd.s32 %s151, 1
      %s153 = scalar_select %p150, %s151, %s152
      %p156 = pneg %p150
      %p157 = scmp.eq.s32.totalorder %s19, 1
      %p158 = por %p156, %p157
      %p159 = scmp.ne.s32.totalorder %s151, %s154
      %p160 = scmp.eq.s32.totalorder %s19, 0
      %p161 = por %p159, %p160
      %p162 = scmp.ne.s32.totalorder %s151, %s154
      %p163 = scmp.eq.s32.totalorder %s24, 1
      %p164 = por %p162, %p163
      %p165 = scmp.ne.s32.totalorder %s154, %s155
      %p166 = scmp.eq.s32.totalorder %s24, 0
      %p167 = por %p165, %p166
      %p168 = scmp.ne.s32.totalorder %s154, %s155
      %p169 = scmp.eq.s32.totalorder %s25, 1
      %p170 = por %p168, %p169
      %p172 = scmp.ne.s32.totalorder %s155, %s171
      %p173 = scmp.eq.s32.totalorder %s25, 0
      %p174 = por %p172, %p173
      %p175 = scmp.le.s32.totalorder 1, %s19
      %p176 = scmp.lt.s32.totalorder %s19, 3
      %p177 = pnand %p175, %p176
      %p178 = pneg %p177
      // Predicated region
      $region9: #{tpu_custom_call.1} parent=5 // pred_check
        _
      $region10: #{tpu_custom_call.1} parent=5 // pred_check_branch
        %180 = sbr.rel (%p177) target = $region12
      $region11: #{tpu_custom_call.1} parent=5 // pred_region
        %s181 = ssub.s32 %s19, 1
      $region12: #{tpu_custom_call.1} parent=5 // pred_fallthru
        _
      %p182 = scmp.lt.s32.totalorder %s19, 2
      // Predicated region
      $region13: #{tpu_custom_call.1} parent=5 // pred_check
        %p183 = pneg %p182
      $region14: #{tpu_custom_call.1} parent=5 // pred_check_branch
        %185 = sbr.rel (%p183) target = $region16
      $region15: #{tpu_custom_call.1} parent=5 // pred_region
        // Predicated region
        $region17: #{tpu_custom_call.1} parent=15 // pred_check
          %p186 = pneg %p51
        $region18: #{tpu_custom_call.1} parent=15 // pred_check_branch
          %188 = sbr.rel (%p186) target = $region20
        $region19: #{tpu_custom_call.1} parent=15 // pred_region
          %p189 = scmp.lt.s32.totalorder %s26, 1
          %s190 = scalar_select %p189, %s26, 1
          %s191 = scalar_lea.vmem %s0, %s190
        $region20: #{tpu_custom_call.1} parent=15 // pred_fallthru
          _
        // Predicated region
        $region21: #{tpu_custom_call.1} parent=15 // pred_check
          %p192 = pneg %p79
        $region22: #{tpu_custom_call.1} parent=15 // pred_check_branch
          %194 = sbr.rel (%p192) target = $region24
        $region23: #{tpu_custom_call.1} parent=15 // pred_region
          %s195 = sand.u32 %s69, 1
          %s196 = scalar_lea.sflag [#allocation6], %s195
          %s197 = sand.u32 %s69, 1
          %s198 = smul.addr %s197, 8
          %s199 = scalar_lea.vmem [#allocation5], %s198
          %s201 = ssub.s32 128, 128
          %202 = vsyncadd %s196, %s201
          %s203 = sadd.s32 %s27, %s26
          %s204 = smul.addr %s203, 128
          %s205 = scalar_lea.hbm %s1, %s204
          %s207 = sshll.u32 %s199, 4
          %s208 = int_to_ptr.vmem [resolvable:$true] %s207
          %210 = dma.hbm_to_vmem [thread:$0]  %s205, 128, %s208, %s196
        $region24: #{tpu_custom_call.1} parent=15 // pred_fallthru
          _
        // Predicated region
        $region25: #{tpu_custom_call.1} parent=15 // pred_check
          %p211 = pneg %p107
        $region26: #{tpu_custom_call.1} parent=15 // pred_check_branch
          %213 = sbr.rel (%p211) target = $region28
        $region27: #{tpu_custom_call.1} parent=15 // pred_region
          %s214 = sand.u32 %s97, 1
          %s215 = scalar_lea.sflag [#allocation9], %s214
          %s216 = sand.u32 %s97, 1
          %s217 = smul.addr %s216, 8
          %s218 = scalar_lea.vmem [#allocation8], %s217
          %s220 = ssub.s32 128, 128
          %221 = vsyncadd %s215, %s220
          %s222 = sadd.s32 %s27, %s26
          %s223 = smul.addr %s222, 128
          %s224 = scalar_lea.hbm %s2, %s223
          %s226 = sshll.u32 %s218, 4
          %s227 = int_to_ptr.vmem [resolvable:$true] %s226
          %229 = dma.hbm_to_vmem [thread:$0]  %s224, 128, %s227, %s215
        $region28: #{tpu_custom_call.1} parent=15 // pred_fallthru
          _
        // Predicated region
        $region29: #{tpu_custom_call.1} parent=15 // pred_check
          %p230 = pneg %p135
        $region30: #{tpu_custom_call.1} parent=15 // pred_check_branch
          %232 = sbr.rel (%p230) target = $region32
        $region31: #{tpu_custom_call.1} parent=15 // pred_region
          %p233 = scmp.lt.s32.totalorder %s26, 1
          %s234 = scalar_select %p233, %s26, 1
          %p235 = scmp.lt.s32.totalorder %s27, 0
          %s236 = scalar_select %p235, %s27, 0
          %s237 = sadd.s32 %s236, %s234
          %s238 = scalar_lea.vmem %s3, %s237
        $region32: #{tpu_custom_call.1} parent=15 // pred_fallthru
          _
      $region16: #{tpu_custom_call.1} parent=5 // pred_fallthru
        _
      %p239 = scmp.le.s32.totalorder 1, %s19
      %p240 = scmp.lt.s32.totalorder %s19, 3
      %p241 = pnand %p239, %p240
      %p242 = pneg %p241
      // Predicated region
      $region33: #{tpu_custom_call.1} parent=5 // pred_check
        _
      $region34: #{tpu_custom_call.1} parent=5 // pred_check_branch
        %244 = sbr.rel (%p241) target = $region36
      $region35: #{tpu_custom_call.1} parent=5 // pred_region
        %s245 = ssub.s32 %s19, 1
        %s246 = sand.u32 %s72, 1
        %s247 = scalar_lea.sflag [#allocation6], %s246
        %s248 = sand.u32 %s72, 1
        %s249 = smul.addr %s248, 8
        %s250 = scalar_lea.vmem [#allocation5], %s249
        // Predicated region
        $region37: #{tpu_custom_call.1} parent=35 // pred_check
          %p251 = pneg %p85
        $region38: #{tpu_custom_call.1} parent=35 // pred_check_branch
          %253 = sbr.rel (%p251) target = $region40
        $region39: #{tpu_custom_call.1} parent=35 // pred_region
          %254 = dma.done %s247, 128
        $region40: #{tpu_custom_call.1} parent=35 // pred_fallthru
          _
        %s255 = sand.u32 %s100, 1
        %s256 = scalar_lea.sflag [#allocation9], %s255
        %s257 = sand.u32 %s100, 1
        %s258 = smul.addr %s257, 8
        %s259 = scalar_lea.vmem [#allocation8], %s258
        // Predicated region
        $region41: #{tpu_custom_call.1} parent=35 // pred_check
          %p260 = pneg %p113
        $region42: #{tpu_custom_call.1} parent=35 // pred_check_branch
          %262 = sbr.rel (%p260) target = $region44
        $region43: #{tpu_custom_call.1} parent=35 // pred_region
          %263 = dma.done %s256, 128
        $region44: #{tpu_custom_call.1} parent=35 // pred_fallthru
          _
        %p264 = scmp.lt.s32.totalorder %s28, 1
        %s265 = scalar_select %p264, %s28, 1
        %s266 = scalar_lea.vmem %s0, %s265
        %p267 = pneg %p57
        %p268 = pneg %p54
        %s269 = sand.u32 %s72, 1
        %s270 = scalar_lea.sflag [#allocation6], %s269
        %s271 = sand.u32 %s72, 1
        %s272 = smul.addr %s271, 8
        %s273 = scalar_lea.vmem [#allocation5], %s272
        %p274 = pneg %p85
        %p275 = pneg %p82
        %s276 = sand.u32 %s100, 1
        %s277 = scalar_lea.sflag [#allocation9], %s276
        %s278 = sand.u32 %s100, 1
        %s279 = smul.addr %s278, 8
        %s280 = scalar_lea.vmem [#allocation8], %s279
        %p281 = pneg %p113
        %p282 = pneg %p110
        %p283 = scmp.lt.s32.totalorder %s28, 1
        %s284 = scalar_select %p283, %s28, 1
        %p285 = scmp.lt.s32.totalorder %s29, 0
        %s286 = scalar_select %p285, %s29, 0
        %s287 = sadd.s32 %s286, %s284
        %s288 = scalar_lea.vmem %s3, %s287
        %p289 = pneg %p141
        %p290 = pneg %p138
        %p291 = pneg %p167
        %p292 = pneg %p164
        %s293 = sand.u32 %s154, 1
        %s294 = scalar_lea.sflag [#allocation7], %s293
        %s295 = sand.u32 %s154, 1
        %s296 = scalar_lea.vmem [#allocation10], %s295
        %p297 = scmp.lt.s32.totalorder %s28, 1
        %s298 = scalar_select %p297, %s28, 1
        %s299 = scalar_lea.vmem %s0, %s298
        %p300 = scmp.lt.s32.totalorder %s28, 1
        %s301 = scalar_select %p300, %s28, 1
        %p302 = scmp.lt.s32.totalorder %s29, 0
        %s303 = scalar_select %p302, %s29, 0
        %s304 = sadd.s32 %s303, %s301
        %s305 = scalar_lea.vmem %s3, %s304
        %p306 = scmp.eq.s32.totalorder %s29, 0
        // Predicated region
        $region45: #{tpu_custom_call.1} parent=35 // pred_check
          %p307 = pneg %p306
        $region46: #{tpu_custom_call.1} parent=35 // pred_check_branch
          %309 = sbr.rel (%p307) target = $region48
        $region47: #{tpu_custom_call.1} parent=35 // pred_region
          %vm310 = vcmask 0
          %311 = vst.msk [vmem:[#allocation2] sm:$0x1] %vm310, -inf
          %312 = vst.msk [vmem:[#allocation3] sm:$0x1] %vm310, 0.0
          %vm313 = vcmask 253952
          %314 = vst.msk [vmem:[#allocation4] sm:$0x1] %vm313, 0.0
        $region48: #{tpu_custom_call.1} parent=35 // pred_fallthru
          _
        %v315 = vld [vmem:[%s299] sm:$0x1]
        %v316 = vld [vmem:[%s250] sm:$0xff]
        %v317 = vld [vmem:[%s259] sm:$0xff]
        %vm318 = vcmask 261120
        %v320 = vsel %vm318, %v315, 0
        %v323 = vsel %vm318, %v316, 0
        %325 = vmatprep.subr.mxu0 0.0
        %326 = vmatpush1.xpose.msra.mxu0 %v323
        %327 = vmatprep.subr.mxu0 0.0
        %328 = vmatpush1.xpose.msra.mxu0 0.0
        %329 = vmatprep.subr.mxu0 0.0
        %330 = vmatpush1.xpose.msra.mxu0 0.0
        %331 = vmatprep.subr.mxu0 0.0
        %332 = vmatpush1.xpose.msra.mxu0 0.0
        %333 = vmatprep.subr.mxu0 0.0
        %334 = vmatpush1.xpose.msra.mxu0 0.0
        %335 = vmatprep.subr.mxu0 0.0
        %336 = vmatpush1.xpose.msra.mxu0 0.0
        %337 = vmatprep.subr.mxu0 0.0
        %338 = vmatpush1.xpose.msra.mxu0 0.0
        %339 = vmatprep.subr.mxu0 0.0
        %340 = vmatpush1.xpose.msra.mxu0 0.0
        %341 = vmatprep.subr.mxu0 0.0
        %342 = vmatpush1.xpose.msra.mxu0 0.0
        %343 = vmatprep.subr.mxu0 0.0
        %344 = vmatpush1.xpose.msra.mxu0 0.0
        %345 = vmatprep.subr.mxu0 0.0
        %346 = vmatpush1.xpose.msra.mxu0 0.0
        %347 = vmatprep.subr.mxu0 0.0
        %348 = vmatpush1.xpose.msra.mxu0 0.0
        %349 = vmatprep.subr.mxu0 0.0
        %350 = vmatpush1.xpose.msra.mxu0 0.0
        %351 = vmatprep.subr.mxu0 0.0
        %352 = vmatpush1.xpose.msra.mxu0 0.0
        %353 = vmatprep.subr.mxu0 0.0
        %354 = vmatpush1.xpose.msra.mxu0 0.0
        %355 = vmatprep.subr.mxu0 0.0
        %356 = vmatpush1.xpose.msra.mxu0 0.0
        %357 = vmatprep.subr.mxu0 0.0
        %358 = vmatpush1.xpose.msra.mxu0 0.0
        %359 = vmatprep.subr.mxu0 0.0
        %360 = vmatpush1.xpose.msra.mxu0 0.0
        %361 = vmatprep.subr.mxu0 0.0
        %362 = vmatpush1.xpose.msra.mxu0 0.0
        %363 = vmatprep.subr.mxu0 0.0
        %364 = vmatpush1.xpose.msra.mxu0 0.0
        %365 = vmatprep.subr.mxu0 0.0
        %366 = vmatpush1.xpose.msra.mxu0 0.0
        %367 = vmatprep.subr.mxu0 0.0
        %368 = vmatpush1.xpose.msra.mxu0 0.0
        %369 = vmatprep.subr.mxu0 0.0
        %370 = vmatpush1.xpose.msra.mxu0 0.0
        %371 = vmatprep.subr.mxu0 0.0
        %372 = vmatpush1.xpose.msra.mxu0 0.0
        %373 = vmatprep.subr.mxu0 0.0
        %374 = vmatpush1.xpose.msra.mxu0 0.0
        %375 = vmatprep.subr.mxu0 0.0
        %376 = vmatpush1.xpose.msra.mxu0 0.0
        %377 = vmatprep.subr.mxu0 0.0
        %378 = vmatpush1.xpose.msra.mxu0 0.0
        %379 = vmatprep.subr.mxu0 0.0
        %380 = vmatpush1.xpose.msra.mxu0 0.0
        %381 = vmatprep.subr.mxu0 0.0
        %382 = vmatpush1.xpose.msra.mxu0 0.0
        %383 = vmatprep.subr.mxu0 0.0
        %384 = vmatpush1.xpose.msra.mxu0 0.0
        %385 = vmatprep.subr.mxu0 0.0
        %386 = vmatpush1.xpose.msra.mxu0 0.0
        %387 = vmatprep.subr.mxu0 0.0
        %388 = vmatpush1.xpose.msra.mxu0 0.0
        %389 = vmatprep.mubr.f32.mxu0 0.0
        %390 = vmatmul.mubr.f32.gmra.mrb[0].mxu0 %v320
        %v391 = vpop.f32.mrb[0].mxu0
        %v392 = vadd.f32 0.0, %v391
        %v393 = vpop.f32.mrb[0].mxu0
        %394 = vdwg.mxu0
        %v395 = vld [vmem:[%s305] sm:$0x1]
        %v396 = vunpack.c.0.s8 %v395
        %v397 = vcvt.s32.f32 %v396
        %vm398 = vcmp.eq.f32.partialorder %v397, 0.0
        %v399 = vsel %vm398, -1e+30, %v392
        %v400 = vld [vmem:[#allocation2] sm:$0x1]
        %vm401 = vcmask 57344
        %v402 = vsel %vm401, %v399, -inf
        %403 = vmax.xlane.f32.xlu0 %v402
        %v404 = vpop.xlane.xlu0 %403
        %v405 = vmax.f32 %v400, %v404
        %v406 = vsub.f32 %v400, %v405
        %v407 = vmul.f32 %v406, 1.442695
        %v408 = vpow.pop %v407
        %410 = vset.pattern.permute.xlu0 0
        %411 = vperm.xlu0 %410, %v405
        %v412 = vpop.permute.xlu0 %411
        %v414 = vlaneseq
        %v415 = vshrl.u32 %v414, 7
        %v416 = vsub.s32 0, %v415
        %v417 = vrot.slane %v412, %v416
        %v418 = vsub.f32 %v399, %v417
        %v419 = vmul.f32 %v418, 1.442695
        %v420 = vpow.pop %v419
        %v421 = vld [vmem:[#allocation3] sm:$0x1]
        %v422 = vmul.f32 %v408, %v421
        %v423 = vsel %vm401, %v420, 0.0
        %424 = vadd.xlane.f32.xlu0 %v423
        %v425 = vpop.xlane.xlu0 %424
        %v426 = vadd.f32 %v422, %v425
        %vm427 = vcmask 0
        %428 = vst.msk [vmem:[#allocation3] sm:$0x1] %vm427, %v426
        %v429 = vld [vmem:[#allocation4] sm:$0x1]
        %431 = vset.pattern.permute.xlu0 0
        %432 = vperm.xlu0 %431, %v408
        %v433 = vpop.permute.xlu0 %432
        %v435 = vlaneseq
        %v436 = vshrl.u32 %v435, 7
        %v437 = vsub.s32 0, %v436
        %v438 = vrot.slane %v433, %v437
        %v439 = vmul.f32 %v438, %v429
        %vm440 = vcmask 64512
        %v442 = vsel %vm440, %v420, 0
        %444 = vmatprep.subr.mxu0 0.0
        %445 = vmatpush1.msra.mxu0 %v317
        %446 = vmatprep.subr.mxu0 0.0
        %447 = vmatpush1.msra.mxu0 0.0
        %448 = vmatprep.subr.mxu0 0.0
        %449 = vmatpush1.msra.mxu0 0.0
        %450 = vmatprep.subr.mxu0 0.0
        %451 = vmatpush1.msra.mxu0 0.0
        %452 = vmatprep.subr.mxu0 0.0
        %453 = vmatpush1.msra.mxu0 0.0
        %454 = vmatprep.subr.mxu0 0.0
        %455 = vmatpush1.msra.mxu0 0.0
        %456 = vmatprep.subr.mxu0 0.0
        %457 = vmatpush1.msra.mxu0 0.0
        %458 = vmatprep.subr.mxu0 0.0
        %459 = vmatpush1.msra.mxu0 0.0
        %460 = vmatprep.subr.mxu0 0.0
        %461 = vmatpush1.msra.mxu0 0.0
        %462 = vmatprep.subr.mxu0 0.0
        %463 = vmatpush1.msra.mxu0 0.0
        %464 = vmatprep.subr.mxu0 0.0
        %465 = vmatpush1.msra.mxu0 0.0
        %466 = vmatprep.subr.mxu0 0.0
        %467 = vmatpush1.msra.mxu0 0.0
        %468 = vmatprep.subr.mxu0 0.0
        %469 = vmatpush1.msra.mxu0 0.0
        %470 = vmatprep.subr.mxu0 0.0
        %471 = vmatpush1.msra.mxu0 0.0
        %472 = vmatprep.subr.mxu0 0.0
        %473 = vmatpush1.msra.mxu0 0.0
        %474 = vmatprep.subr.mxu0 0.0
        %475 = vmatpush1.msra.mxu0 0.0
        %476 = vmatprep.subr.mxu0 0.0
        %477 = vmatpush1.msra.mxu0 0.0
        %478 = vmatprep.subr.mxu0 0.0
        %479 = vmatpush1.msra.mxu0 0.0
        %480 = vmatprep.subr.mxu0 0.0
        %481 = vmatpush1.msra.mxu0 0.0
        %482 = vmatprep.subr.mxu0 0.0
        %483 = vmatpush1.msra.mxu0 0.0
        %484 = vmatprep.subr.mxu0 0.0
        %485 = vmatpush1.msra.mxu0 0.0
        %486 = vmatprep.subr.mxu0 0.0
        %487 = vmatpush1.msra.mxu0 0.0
        %488 = vmatprep.subr.mxu0 0.0
        %489 = vmatpush1.msra.mxu0 0.0
        %490 = vmatprep.subr.mxu0 0.0
        %491 = vmatpush1.msra.mxu0 0.0
        %492 = vmatprep.subr.mxu0 0.0
        %493 = vmatpush1.msra.mxu0 0.0
        %494 = vmatprep.subr.mxu0 0.0
        %495 = vmatpush1.msra.mxu0 0.0
        %496 = vmatprep.subr.mxu0 0.0
        %497 = vmatpush1.msra.mxu0 0.0
        %498 = vmatprep.subr.mxu0 0.0
        %499 = vmatpush1.msra.mxu0 0.0
        %500 = vmatprep.subr.mxu0 0.0
        %501 = vmatpush1.msra.mxu0 0.0
        %502 = vmatprep.subr.mxu0 0.0
        %503 = vmatpush1.msra.mxu0 0.0
        %504 = vmatprep.subr.mxu0 0.0
        %505 = vmatpush1.msra.mxu0 0.0
        %506 = vmatprep.subr.mxu0 0.0
        %507 = vmatpush1.msra.mxu0 0.0
        %508 = vmatprep.mubr.f32.mxu0 0.0
        %509 = vmatmul.mubr.f32.gmra.mrb[0].mxu0 %v442
        %v510 = vpop.f32.mrb[0].mxu0
        %v511 = vadd.f32 0.0, %v510
        %v512 = vpop.f32.mrb[0].mxu0
        %513 = vdwg.mxu0
        %v514 = vadd.f32 %v439, %v511
        %vm515 = vcmask 253952
        %516 = vst.msk [vmem:[#allocation4] sm:$0x1] %vm515, %v514
        %517 = vst.msk [vmem:[#allocation2] sm:$0x1] %vm427, %v405
        // Predicated region
        $region49: #{tpu_custom_call.1} parent=35 // pred_check
          %p518 = pneg %p306
        $region50: #{tpu_custom_call.1} parent=35 // pred_check_branch
          %520 = sbr.rel (%p518) target = $region52
        $region51: #{tpu_custom_call.1} parent=35 // pred_region
          %v521 = vld [vmem:[#allocation4] sm:$0x1]
          %v522 = vld [vmem:[#allocation3] sm:$0x1]
          %524 = vset.pattern.permute.xlu0 0
          %525 = vperm.xlu0 %524, %v522
          %v526 = vpop.permute.xlu0 %525
          %v528 = vlaneseq
          %v529 = vshrl.u32 %v528, 7
          %v530 = vsub.s32 0, %v529
          %v531 = vrot.slane %v526, %v530
          %v532 = vrcp.pop %v531
          %v533 = vmul.f32 %v521, %v532
          %534 = vst.msk [vmem:[%s296] sm:$0x1] %vm515, %v533
        $region52: #{tpu_custom_call.1} parent=35 // pred_fallthru
          _
        %s535 = sand.u32 %s154, 1
        %s536 = scalar_lea.sflag [#allocation7], %s535
        %s537 = sand.u32 %s154, 1
        %s538 = scalar_lea.vmem [#allocation10], %s537
        // Predicated region
        $region53: #{tpu_custom_call.1} parent=35 // pred_check
          %p539 = pneg %p164
        $region54: #{tpu_custom_call.1} parent=35 // pred_check_branch
          %541 = sbr.rel (%p539) target = $region56
        $region55: #{tpu_custom_call.1} parent=35 // pred_region
          %s543 = ssub.s32 16, 16
          %544 = vsyncadd %s536, %s543
          %s545 = smul.addr %s28, 16
          %s546 = scalar_lea.hbm %s4, %s545
          %s548 = sshll.u32 %s538, 4
          %s549 = int_to_ptr.vmem [resolvable:$true] %s548
          %551 = dma.vmem_to_hbm [thread:$0]  %s549, 16, %s546, %s536
        $region56: #{tpu_custom_call.1} parent=35 // pred_fallthru
          _
      $region36: #{tpu_custom_call.1} parent=5 // pred_fallthru
        _
      %p552 = scmp.le.s32.totalorder 2, %s19
      // Predicated region
      $region57: #{tpu_custom_call.1} parent=5 // pred_check
        %p553 = pneg %p552
      $region58: #{tpu_custom_call.1} parent=5 // pred_check_branch
        %555 = sbr.rel (%p553) target = $region60
      $region59: #{tpu_custom_call.1} parent=5 // pred_region
        %s556 = ssub.s32 %s19, 2
        // Predicated region
        $region61: #{tpu_custom_call.1} parent=59 // pred_check
          %p557 = pneg %p170
        $region62: #{tpu_custom_call.1} parent=59 // pred_check_branch
          %559 = sbr.rel (%p557) target = $region64
        $region63: #{tpu_custom_call.1} parent=59 // pred_region
          %s560 = sand.u32 %s155, 1
          %s561 = scalar_lea.sflag [#allocation7], %s560
          %s562 = sand.u32 %s155, 1
          %s563 = scalar_lea.vmem [#allocation10], %s562
          %564 = dma.done %s561, 16
        $region64: #{tpu_custom_call.1} parent=59 // pred_fallthru
          _
      $region60: #{tpu_custom_call.1} parent=5 // pred_fallthru
        _
    $region6: #{tpu_custom_call.1} parent=1 // loop_footer
      %s23 = sadd.s32 1, %s19
    $region7: #{tpu_custom_call.1} parent=1 // loop_footer_branch
      %18 = sbr.rel target = $region3
    $region8: #{tpu_custom_call.1} parent=1 // loop_exit
      _
    %565 = vsyncpa [#allocation6], 1
    %s566 = scalar_lea.sflag [#allocation6], 1
    %567 = vsyncpa %s566, 1
    %568 = vsyncpa [#allocation9], 1
    %s569 = scalar_lea.sflag [#allocation9], 1
    %570 = vsyncpa %s569, 1
    %571 = vsyncpa [#allocation7], 1
    %s572 = scalar_lea.sflag [#allocation7], 1
    %573 = vsyncpa %s572, 1

</llo_original>
